<compile_context>
chip_gen: v6e
topology: v6e:2x2x1
jax: 0.10.0
libtpu: 0.0.40
codegen_flags: <defaults>
</compile_context>

<pallas_src>
import functools
import math

import jax
import jax.numpy as jnp
from jax import lax
from jax.experimental import pallas as pl
from jax.experimental.pallas import tpu as pltpu


def _round_up(n, m):
    return ((n + m - 1) // m) * m


# ----------------------------- Pallas kernel --------------------------------
def _lora_cls_kernel(ids_ref, mask_ref, denom_ref, emb_hbm, w1_ref, b1_ref,
                     w2_ref, b2_ref, logits_ref, gath_ref, sem, *, seq_len):
    """Fused embedding row-gather + masked mean pool + tanh pooler + classifier.

    ids_ref   : (B*S,) int32 in SMEM (scalar reads drive the gather DMAs)
    mask_ref  : (1, B*S) f32 in VMEM (exact {0,1})
    denom_ref : (Bp, 1) f32 in VMEM (clamped >= 1)
    emb_hbm   : (V, Hp) f32 left in HBM; only B*S rows are ever DMA'd
    gath_ref  : (B*S, Hp) f32 VMEM scratch for the gathered rows
    """
    num_tok, _ = gath_ref.shape
    bp = logits_ref.shape[0]

    # --- 1. Row gather: issue one small DMA per token, then drain them all.
    copies = []
    for t in range(num_tok):                       # static unroll (toy: 16)
        cp = pltpu.make_async_copy(
            emb_hbm.at[pl.ds(ids_ref[t], 1)],      # (1, Hp) row in HBM
            gath_ref.at[pl.ds(t, 1)],              # (1, Hp) VMEM slot
            sem)
        cp.start()
        copies.append(cp)
    for cp in copies:
        cp.wait()

    # --- 2. Masked mean pool: exact {0,1} token->batch matrix, MXU matmul,
    #        then post-matmul normalization via approx reciprocal (EUP slot).
    t_iota = lax.broadcasted_iota(jnp.int32, (bp, num_tok), 1)
    b_iota = lax.broadcasted_iota(jnp.int32, (bp, num_tok), 0)
    rel = t_iota - b_iota * seq_len
    hit = (rel >= 0) & (rel < seq_len)                       # token t in row b
    psum = jnp.where(hit, mask_ref[...], 0.0)                # (bp, B*S) exact 0/1
    pooled = jnp.dot(psum, gath_ref[...],
                     preferred_element_type=jnp.float32)     # (bp, Hp) f32
    pooled = pooled * pl.reciprocal(denom_ref[...], approx=True)

    # --- 3. Pooler (tanh) + classifier head: bf16 MXU, f32 accumulation.
    h = jnp.tanh(
        jnp.dot(pooled.astype(w1_ref.dtype), w1_ref[...],
                preferred_element_type=jnp.float32) + b1_ref[...])
    logits_ref[...] = (
        jnp.dot(h.astype(w2_ref.dtype), w2_ref[...],
                preferred_element_type=jnp.float32) + b2_ref[...])


# ------------------------------ host wrappers --------------------------------
def init_params(key, vocab=64, hidden=32, num_labels=4):
    k1, k2, k3 = jax.random.split(key, 3)
    scale = 0.02
    params = {
        "embedding": scale * jax.random.normal(k1, (vocab, hidden), jnp.float32),
        "w1": scale * jax.random.normal(k2, (hidden, hidden), jnp.float32),
        "b1": jnp.zeros((1, hidden), jnp.float32),
        "w2": scale * jax.random.normal(k3, (hidden, num_labels), jnp.float32),
        "b2": jnp.zeros((1, num_labels), jnp.float32),
    }
    # LoRA deltas: zeros_like every weight (matches the reference
    # _add_lora_layers, which registers torch.zeros_like(param)).
    params["embedding_lora"] = jnp.zeros_like(params["embedding"])
    params["w1_lora"] = jnp.zeros_like(params["w1"])
    params["w2_lora"] = jnp.zeros_like(params["w2"])
    return params


def fold_lora_and_pad(params, lane_multiple=128):
    """Fold LoRA deltas into the weights ONCE (no-op: deltas are zero, matching
    the reference), pad lane dims, and pre-cast the pooler/classifier weights to
    bf16 (hoisted cast; biases stay f32).  The embedding table stays f32 and is
    NOT padded along vocab: with the in-kernel row gather it never enters VMEM
    wholesale, so only Hp (the gathered row length) needs lane alignment.
    # TODO(synk): use lane_multiple=256 at realistic H/C on v6e/v7x MXUs.
    """
    emb = params["embedding"] + params["embedding_lora"]
    w1 = params["w1"] + params["w1_lora"]
    w2 = params["w2"] + params["w2_lora"]
    V, H = emb.shape
    C = w2.shape[1]
    Hp = _round_up(H, lane_multiple)
    Cp = _round_up(C, lane_multiple)
    f32 = jnp.float32
    return {
        "emb": jnp.zeros((V, Hp), f32).at[:, :H].set(emb),       # f32, HBM-resident
        "w1": jnp.zeros((Hp, Hp), f32).at[:H, :H].set(w1).astype(jnp.bfloat16),
        "b1": jnp.zeros((1, Hp), f32).at[:, :H].set(params["b1"]),
        "w2": jnp.zeros((Hp, Cp), f32).at[:H, :C].set(w2).astype(jnp.bfloat16),
        "b2": jnp.zeros((1, Cp), f32).at[:, :C].set(params["b2"]),
    }


@functools.partial(jax.jit, static_argnames=("num_labels",))
def lora_classifier_forward(input_ids, attention_mask, labels, folded,
                            num_labels):
    """Returns (loss, logits) exactly like the reference forward()."""
    B, S = input_ids.shape
    Bp = _round_up(max(B, 8), 8)
    Hp = folded["emb"].shape[1]
    Cp = folded["w2"].shape[1]

    ids_flat = input_ids.reshape(B * S).astype(jnp.int32)          # SMEM scalars
    maskf = attention_mask.astype(jnp.float32)                     # (B, S) {0,1}
    mask_row = maskf.reshape(1, B * S)
    denom = jnp.ones((Bp, 1), jnp.float32).at[:B, 0].set(
        jnp.maximum(maskf.sum(axis=1), 1.0))                       # padded rows -> 1

    inputs = (ids_flat, mask_row, denom, folded["emb"], folded["w1"],
              folded["b1"], folded["w2"], folded["b2"])

    vmem = pl.BlockSpec(memory_space=pltpu.MemorySpace.VMEM)
    in_specs = [
        pl.BlockSpec(memory_space=pltpu.MemorySpace.SMEM),   # token ids
        vmem,                                                # mask row
        vmem,                                                # denom
        pl.BlockSpec(memory_space=pl.ANY),                   # emb table: stays in HBM
        vmem, vmem, vmem, vmem,                              # w1, b1, w2, b2
    ]

    flops = 2 * Bp * (B * S * Hp + Hp * Hp + Hp * Cp)
    bytes_accessed = (
        B * S * Hp * 4                                        # gathered rows only
        + sum(int(math.prod(a.shape)) * a.dtype.itemsize
              for a in (inputs[:3] + inputs[4:]))             # small dense inputs
        + Bp * Cp * 4)                                        # logits writeback

    logits_p = pl.pallas_call(
        functools.partial(_lora_cls_kernel, seq_len=S),
        out_shape=jax.ShapeDtypeStruct((Bp, Cp), jnp.float32),
        in_specs=in_specs,
        out_specs=pl.BlockSpec(memory_space=pltpu.MemorySpace.VMEM),
        scratch_shapes=[
            pltpu.VMEM((B * S, Hp), jnp.float32),   # gathered embedding rows
            pltpu.SemaphoreType.DMA(()),            # shared gather semaphore
        ],
        cost_estimate=pl.CostEstimate(
            flops=flops, transcendentals=Bp * Hp + Bp,
            bytes_accessed=bytes_accessed),
    )(*inputs)

    logits = logits_p[:B, :num_labels]   # padded rows/classes sliced BEFORE softmax

    # Cross-entropy (mean over batch) on the tiny un-padded logits in plain XLA.
    logp = jax.nn.log_softmax(logits, axis=-1)
    loss = -jnp.mean(jnp.take_along_axis(logp, labels[:, None], axis=-1))
    return loss, logits


if __name__ == "__main__":
    B, S, VOCAB, H, C = 2, 8, 64, 32, 4
    key = jax.random.PRNGKey(0)
    kp, ki, kl = jax.random.split(key, 3)

    params = init_params(kp, vocab=VOCAB, hidden=H, num_labels=C)
    # Reference folds the (zero) LoRA deltas into the weights after forward();
    # since the deltas are zeros this is a no-op, done functionally here once.
    folded = fold_lora_and_pad(params)

    input_ids = jax.random.randint(ki, (B, S), 0, VOCAB, dtype=jnp.int32)
    attention_mask = jnp.ones((B, S), jnp.float32).at[1, -1].set(0.0)
    labels = jax.random.randint(kl, (B,), 0, C, dtype=jnp.int32)

    loss, logits = lora_classifier_forward(
        input_ids, attention_mask, labels, folded, num_labels=C)
    jax.block_until_ready((loss, logits))

    # Pure-JAX reference on the same folded weights (sanity check).
    embf = folded["emb"].astype(jnp.float32)
    gath = embf[input_ids.reshape(-1)]                           # (B*S, Hp)
    mcol = attention_mask.reshape(-1, 1)
    pooled = (gath * mcol).reshape(B, S, -1).sum(axis=1) / jnp.maximum(
        attention_mask.sum(axis=1, keepdims=True), 1.0)
    h = jnp.tanh(pooled @ folded["w1"].astype(jnp.float32) + folded["b1"])
    ref_logits = (h @ folded["w2"].astype(jnp.float32) + folded["b2"])[:, :C]
    assert jnp.allclose(logits, ref_logits, atol=5e-3, rtol=2e-2), "logits mismatch"
    assert bool(jnp.isfinite(loss)), "non-finite loss"

    print("KERNEL_OK")
</pallas_src>

<mosaic_0001>
module attributes {stable_mosaic.version = 11 : i64} {
  func.func @_lora_cls_kernel(%arg0: memref<16xi32, #tpu.memory_space<smem>>, %arg1: memref<1x16xf32, #tpu.memory_space<vmem>>, %arg2: memref<8x1xf32, #tpu.memory_space<vmem>>, %arg3: memref<64x128xf32, #tpu.memory_space<any>>, %arg4: memref<128x128xbf16, #tpu.memory_space<vmem>>, %arg5: memref<1x128xf32, #tpu.memory_space<vmem>>, %arg6: memref<128x128xbf16, #tpu.memory_space<vmem>>, %arg7: memref<1x128xf32, #tpu.memory_space<vmem>>, %arg8: memref<8x128xf32, #tpu.memory_space<vmem>>, %arg9: memref<16x128xf32, #tpu.memory_space<vmem>>, %arg10: memref<!tpu.dma_semaphore, #tpu.memory_space<semaphore_mem>>) attributes {dimension_semantics = [], scalar_prefetch = 0 : i64, scratch_operands = 2 : i64, tpu.core_type = #tpu.core_type<tc>} {
    %c0 = arith.constant 0 : index
    %0 = memref.load %arg0[%c0] : memref<16xi32, #tpu.memory_space<smem>>
    %c0_i32 = arith.constant 0 : i32
    %1 = tpu.memref_slice %arg3[%0, %c0_i32] : memref<64x128xf32, #tpu.memory_space<any>> -> memref<1x128xf32, #tpu.memory_space<any>>
    %c0_i32_0 = arith.constant 0 : i32
    %c0_i32_1 = arith.constant 0 : i32
    %2 = tpu.memref_slice %arg9[%c0_i32_0, %c0_i32_1] : memref<16x128xf32, #tpu.memory_space<vmem>> -> memref<1x128xf32, #tpu.memory_space<vmem>>
    tpu.enqueue_dma source(%1 : memref<1x128xf32, #tpu.memory_space<any>>) target(%2 : memref<1x128xf32, #tpu.memory_space<vmem>>) target_semaphore(%arg10 : memref<!tpu.dma_semaphore, #tpu.memory_space<semaphore_mem>>)
    %c1 = arith.constant 1 : index
    %3 = memref.load %arg0[%c1] : memref<16xi32, #tpu.memory_space<smem>>
    %c0_i32_2 = arith.constant 0 : i32
    %4 = tpu.memref_slice %arg3[%3, %c0_i32_2] : memref<64x128xf32, #tpu.memory_space<any>> -> memref<1x128xf32, #tpu.memory_space<any>>
    %c1_i32 = arith.constant 1 : i32
    %c0_i32_3 = arith.constant 0 : i32
    %5 = tpu.memref_slice %arg9[%c1_i32, %c0_i32_3] : memref<16x128xf32, #tpu.memory_space<vmem>> -> memref<1x128xf32, #tpu.memory_space<vmem>>
    tpu.enqueue_dma source(%4 : memref<1x128xf32, #tpu.memory_space<any>>) target(%5 : memref<1x128xf32, #tpu.memory_space<vmem>>) target_semaphore(%arg10 : memref<!tpu.dma_semaphore, #tpu.memory_space<semaphore_mem>>)
    %c2 = arith.constant 2 : index
    %6 = memref.load %arg0[%c2] : memref<16xi32, #tpu.memory_space<smem>>
    %c0_i32_4 = arith.constant 0 : i32
    %7 = tpu.memref_slice %arg3[%6, %c0_i32_4] : memref<64x128xf32, #tpu.memory_space<any>> -> memref<1x128xf32, #tpu.memory_space<any>>
    %c2_i32 = arith.constant 2 : i32
    %c0_i32_5 = arith.constant 0 : i32
    %8 = tpu.memref_slice %arg9[%c2_i32, %c0_i32_5] : memref<16x128xf32, #tpu.memory_space<vmem>> -> memref<1x128xf32, #tpu.memory_space<vmem>>
    tpu.enqueue_dma source(%7 : memref<1x128xf32, #tpu.memory_space<any>>) target(%8 : memref<1x128xf32, #tpu.memory_space<vmem>>) target_semaphore(%arg10 : memref<!tpu.dma_semaphore, #tpu.memory_space<semaphore_mem>>)
    %c3 = arith.constant 3 : index
    %9 = memref.load %arg0[%c3] : memref<16xi32, #tpu.memory_space<smem>>
    %c0_i32_6 = arith.constant 0 : i32
    %10 = tpu.memref_slice %arg3[%9, %c0_i32_6] : memref<64x128xf32, #tpu.memory_space<any>> -> memref<1x128xf32, #tpu.memory_space<any>>
    %c3_i32 = arith.constant 3 : i32
    %c0_i32_7 = arith.constant 0 : i32
    %11 = tpu.memref_slice %arg9[%c3_i32, %c0_i32_7] : memref<16x128xf32, #tpu.memory_space<vmem>> -> memref<1x128xf32, #tpu.memory_space<vmem>>
    tpu.enqueue_dma source(%10 : memref<1x128xf32, #tpu.memory_space<any>>) target(%11 : memref<1x128xf32, #tpu.memory_space<vmem>>) target_semaphore(%arg10 : memref<!tpu.dma_semaphore, #tpu.memory_space<semaphore_mem>>)
    %c4 = arith.constant 4 : index
    %12 = memref.load %arg0[%c4] : memref<16xi32, #tpu.memory_space<smem>>
    %c0_i32_8 = arith.constant 0 : i32
    %13 = tpu.memref_slice %arg3[%12, %c0_i32_8] : memref<64x128xf32, #tpu.memory_space<any>> -> memref<1x128xf32, #tpu.memory_space<any>>
    %c4_i32 = arith.constant 4 : i32
    %c0_i32_9 = arith.constant 0 : i32
    %14 = tpu.memref_slice %arg9[%c4_i32, %c0_i32_9] : memref<16x128xf32, #tpu.memory_space<vmem>> -> memref<1x128xf32, #tpu.memory_space<vmem>>
    tpu.enqueue_dma source(%13 : memref<1x128xf32, #tpu.memory_space<any>>) target(%14 : memref<1x128xf32, #tpu.memory_space<vmem>>) target_semaphore(%arg10 : memref<!tpu.dma_semaphore, #tpu.memory_space<semaphore_mem>>)
    %c5 = arith.constant 5 : index
    %15 = memref.load %arg0[%c5] : memref<16xi32, #tpu.memory_space<smem>>
    %c0_i32_10 = arith.constant 0 : i32
    %16 = tpu.memref_slice %arg3[%15, %c0_i32_10] : memref<64x128xf32, #tpu.memory_space<any>> -> memref<1x128xf32, #tpu.memory_space<any>>
    %c5_i32 = arith.constant 5 : i32
    %c0_i32_11 = arith.constant 0 : i32
    %17 = tpu.memref_slice %arg9[%c5_i32, %c0_i32_11] : memref<16x128xf32, #tpu.memory_space<vmem>> -> memref<1x128xf32, #tpu.memory_space<vmem>>
    tpu.enqueue_dma source(%16 : memref<1x128xf32, #tpu.memory_space<any>>) target(%17 : memref<1x128xf32, #tpu.memory_space<vmem>>) target_semaphore(%arg10 : memref<!tpu.dma_semaphore, #tpu.memory_space<semaphore_mem>>)
    %c6 = arith.constant 6 : index
    %18 = memref.load %arg0[%c6] : memref<16xi32, #tpu.memory_space<smem>>
    %c0_i32_12 = arith.constant 0 : i32
    %19 = tpu.memref_slice %arg3[%18, %c0_i32_12] : memref<64x128xf32, #tpu.memory_space<any>> -> memref<1x128xf32, #tpu.memory_space<any>>
    %c6_i32 = arith.constant 6 : i32
    %c0_i32_13 = arith.constant 0 : i32
    %20 = tpu.memref_slice %arg9[%c6_i32, %c0_i32_13] : memref<16x128xf32, #tpu.memory_space<vmem>> -> memref<1x128xf32, #tpu.memory_space<vmem>>
    tpu.enqueue_dma source(%19 : memref<1x128xf32, #tpu.memory_space<any>>) target(%20 : memref<1x128xf32, #tpu.memory_space<vmem>>) target_semaphore(%arg10 : memref<!tpu.dma_semaphore, #tpu.memory_space<semaphore_mem>>)
    %c7 = arith.constant 7 : index
    %21 = memref.load %arg0[%c7] : memref<16xi32, #tpu.memory_space<smem>>
    %c0_i32_14 = arith.constant 0 : i32
    %22 = tpu.memref_slice %arg3[%21, %c0_i32_14] : memref<64x128xf32, #tpu.memory_space<any>> -> memref<1x128xf32, #tpu.memory_space<any>>
    %c7_i32 = arith.constant 7 : i32
    %c0_i32_15 = arith.constant 0 : i32
    %23 = tpu.memref_slice %arg9[%c7_i32, %c0_i32_15] : memref<16x128xf32, #tpu.memory_space<vmem>> -> memref<1x128xf32, #tpu.memory_space<vmem>>
    tpu.enqueue_dma source(%22 : memref<1x128xf32, #tpu.memory_space<any>>) target(%23 : memref<1x128xf32, #tpu.memory_space<vmem>>) target_semaphore(%arg10 : memref<!tpu.dma_semaphore, #tpu.memory_space<semaphore_mem>>)
    %c8 = arith.constant 8 : index
    %24 = memref.load %arg0[%c8] : memref<16xi32, #tpu.memory_space<smem>>
    %c0_i32_16 = arith.constant 0 : i32
    %25 = tpu.memref_slice %arg3[%24, %c0_i32_16] : memref<64x128xf32, #tpu.memory_space<any>> -> memref<1x128xf32, #tpu.memory_space<any>>
    %c8_i32 = arith.constant 8 : i32
    %c0_i32_17 = arith.constant 0 : i32
    %26 = tpu.memref_slice %arg9[%c8_i32, %c0_i32_17] : memref<16x128xf32, #tpu.memory_space<vmem>> -> memref<1x128xf32, #tpu.memory_space<vmem>>
    tpu.enqueue_dma source(%25 : memref<1x128xf32, #tpu.memory_space<any>>) target(%26 : memref<1x128xf32, #tpu.memory_space<vmem>>) target_semaphore(%arg10 : memref<!tpu.dma_semaphore, #tpu.memory_space<semaphore_mem>>)
    %c9 = arith.constant 9 : index
    %27 = memref.load %arg0[%c9] : memref<16xi32, #tpu.memory_space<smem>>
    %c0_i32_18 = arith.constant 0 : i32
    %28 = tpu.memref_slice %arg3[%27, %c0_i32_18] : memref<64x128xf32, #tpu.memory_space<any>> -> memref<1x128xf32, #tpu.memory_space<any>>
    %c9_i32 = arith.constant 9 : i32
    %c0_i32_19 = arith.constant 0 : i32
    %29 = tpu.memref_slice %arg9[%c9_i32, %c0_i32_19] : memref<16x128xf32, #tpu.memory_space<vmem>> -> memref<1x128xf32, #tpu.memory_space<vmem>>
    tpu.enqueue_dma source(%28 : memref<1x128xf32, #tpu.memory_space<any>>) target(%29 : memref<1x128xf32, #tpu.memory_space<vmem>>) target_semaphore(%arg10 : memref<!tpu.dma_semaphore, #tpu.memory_space<semaphore_mem>>)
    %c10 = arith.constant 10 : index
    %30 = memref.load %arg0[%c10] : memref<16xi32, #tpu.memory_space<smem>>
    %c0_i32_20 = arith.constant 0 : i32
    %31 = tpu.memref_slice %arg3[%30, %c0_i32_20] : memref<64x128xf32, #tpu.memory_space<any>> -> memref<1x128xf32, #tpu.memory_space<any>>
    %c10_i32 = arith.constant 10 : i32
    %c0_i32_21 = arith.constant 0 : i32
    %32 = tpu.memref_slice %arg9[%c10_i32, %c0_i32_21] : memref<16x128xf32, #tpu.memory_space<vmem>> -> memref<1x128xf32, #tpu.memory_space<vmem>>
    tpu.enqueue_dma source(%31 : memref<1x128xf32, #tpu.memory_space<any>>) target(%32 : memref<1x128xf32, #tpu.memory_space<vmem>>) target_semaphore(%arg10 : memref<!tpu.dma_semaphore, #tpu.memory_space<semaphore_mem>>)
    %c11 = arith.constant 11 : index
    %33 = memref.load %arg0[%c11] : memref<16xi32, #tpu.memory_space<smem>>
    %c0_i32_22 = arith.constant 0 : i32
    %34 = tpu.memref_slice %arg3[%33, %c0_i32_22] : memref<64x128xf32, #tpu.memory_space<any>> -> memref<1x128xf32, #tpu.memory_space<any>>
    %c11_i32 = arith.constant 11 : i32
    %c0_i32_23 = arith.constant 0 : i32
    %35 = tpu.memref_slice %arg9[%c11_i32, %c0_i32_23] : memref<16x128xf32, #tpu.memory_space<vmem>> -> memref<1x128xf32, #tpu.memory_space<vmem>>
    tpu.enqueue_dma source(%34 : memref<1x128xf32, #tpu.memory_space<any>>) target(%35 : memref<1x128xf32, #tpu.memory_space<vmem>>) target_semaphore(%arg10 : memref<!tpu.dma_semaphore, #tpu.memory_space<semaphore_mem>>)
    %c12 = arith.constant 12 : index
    %36 = memref.load %arg0[%c12] : memref<16xi32, #tpu.memory_space<smem>>
    %c0_i32_24 = arith.constant 0 : i32
    %37 = tpu.memref_slice %arg3[%36, %c0_i32_24] : memref<64x128xf32, #tpu.memory_space<any>> -> memref<1x128xf32, #tpu.memory_space<any>>
    %c12_i32 = arith.constant 12 : i32
    %c0_i32_25 = arith.constant 0 : i32
    %38 = tpu.memref_slice %arg9[%c12_i32, %c0_i32_25] : memref<16x128xf32, #tpu.memory_space<vmem>> -> memref<1x128xf32, #tpu.memory_space<vmem>>
    tpu.enqueue_dma source(%37 : memref<1x128xf32, #tpu.memory_space<any>>) target(%38 : memref<1x128xf32, #tpu.memory_space<vmem>>) target_semaphore(%arg10 : memref<!tpu.dma_semaphore, #tpu.memory_space<semaphore_mem>>)
    %c13 = arith.constant 13 : index
    %39 = memref.load %arg0[%c13] : memref<16xi32, #tpu.memory_space<smem>>
    %c0_i32_26 = arith.constant 0 : i32
    %40 = tpu.memref_slice %arg3[%39, %c0_i32_26] : memref<64x128xf32, #tpu.memory_space<any>> -> memref<1x128xf32, #tpu.memory_space<any>>
    %c13_i32 = arith.constant 13 : i32
    %c0_i32_27 = arith.constant 0 : i32
    %41 = tpu.memref_slice %arg9[%c13_i32, %c0_i32_27] : memref<16x128xf32, #tpu.memory_space<vmem>> -> memref<1x128xf32, #tpu.memory_space<vmem>>
    tpu.enqueue_dma source(%40 : memref<1x128xf32, #tpu.memory_space<any>>) target(%41 : memref<1x128xf32, #tpu.memory_space<vmem>>) target_semaphore(%arg10 : memref<!tpu.dma_semaphore, #tpu.memory_space<semaphore_mem>>)
    %c14 = arith.constant 14 : index
    %42 = memref.load %arg0[%c14] : memref<16xi32, #tpu.memory_space<smem>>
    %c0_i32_28 = arith.constant 0 : i32
    %43 = tpu.memref_slice %arg3[%42, %c0_i32_28] : memref<64x128xf32, #tpu.memory_space<any>> -> memref<1x128xf32, #tpu.memory_space<any>>
    %c14_i32 = arith.constant 14 : i32
    %c0_i32_29 = arith.constant 0 : i32
    %44 = tpu.memref_slice %arg9[%c14_i32, %c0_i32_29] : memref<16x128xf32, #tpu.memory_space<vmem>> -> memref<1x128xf32, #tpu.memory_space<vmem>>
    tpu.enqueue_dma source(%43 : memref<1x128xf32, #tpu.memory_space<any>>) target(%44 : memref<1x128xf32, #tpu.memory_space<vmem>>) target_semaphore(%arg10 : memref<!tpu.dma_semaphore, #tpu.memory_space<semaphore_mem>>)
    %c15 = arith.constant 15 : index
    %45 = memref.load %arg0[%c15] : memref<16xi32, #tpu.memory_space<smem>>
    %c0_i32_30 = arith.constant 0 : i32
    %46 = tpu.memref_slice %arg3[%45, %c0_i32_30] : memref<64x128xf32, #tpu.memory_space<any>> -> memref<1x128xf32, #tpu.memory_space<any>>
    %c15_i32 = arith.constant 15 : i32
    %c0_i32_31 = arith.constant 0 : i32
    %47 = tpu.memref_slice %arg9[%c15_i32, %c0_i32_31] : memref<16x128xf32, #tpu.memory_space<vmem>> -> memref<1x128xf32, #tpu.memory_space<vmem>>
    tpu.enqueue_dma source(%46 : memref<1x128xf32, #tpu.memory_space<any>>) target(%47 : memref<1x128xf32, #tpu.memory_space<vmem>>) target_semaphore(%arg10 : memref<!tpu.dma_semaphore, #tpu.memory_space<semaphore_mem>>)
    %c0_i32_32 = arith.constant 0 : i32
    %48 = tpu.memref_slice %arg3[%0, %c0_i32_32] : memref<64x128xf32, #tpu.memory_space<any>> -> memref<1x128xf32, #tpu.memory_space<any>>
    %c0_i32_33 = arith.constant 0 : i32
    %c0_i32_34 = arith.constant 0 : i32
    %49 = tpu.memref_slice %arg9[%c0_i32_33, %c0_i32_34] : memref<16x128xf32, #tpu.memory_space<vmem>> -> memref<1x128xf32, #tpu.memory_space<vmem>>
    tpu.wait_dma2 semaphore(%arg10 : memref<!tpu.dma_semaphore, #tpu.memory_space<semaphore_mem>>) src(%48 : memref<1x128xf32, #tpu.memory_space<any>>) dst(%49 : memref<1x128xf32, #tpu.memory_space<vmem>>)
    %c0_i32_35 = arith.constant 0 : i32
    %50 = tpu.memref_slice %arg3[%3, %c0_i32_35] : memref<64x128xf32, #tpu.memory_space<any>> -> memref<1x128xf32, #tpu.memory_space<any>>
    %c1_i32_36 = arith.constant 1 : i32
    %c0_i32_37 = arith.constant 0 : i32
    %51 = tpu.memref_slice %arg9[%c1_i32_36, %c0_i32_37] : memref<16x128xf32, #tpu.memory_space<vmem>> -> memref<1x128xf32, #tpu.memory_space<vmem>>
    tpu.wait_dma2 semaphore(%arg10 : memref<!tpu.dma_semaphore, #tpu.memory_space<semaphore_mem>>) src(%50 : memref<1x128xf32, #tpu.memory_space<any>>) dst(%51 : memref<1x128xf32, #tpu.memory_space<vmem>>)
    %c0_i32_38 = arith.constant 0 : i32
    %52 = tpu.memref_slice %arg3[%6, %c0_i32_38] : memref<64x128xf32, #tpu.memory_space<any>> -> memref<1x128xf32, #tpu.memory_space<any>>
    %c2_i32_39 = arith.constant 2 : i32
    %c0_i32_40 = arith.constant 0 : i32
    %53 = tpu.memref_slice %arg9[%c2_i32_39, %c0_i32_40] : memref<16x128xf32, #tpu.memory_space<vmem>> -> memref<1x128xf32, #tpu.memory_space<vmem>>
    tpu.wait_dma2 semaphore(%arg10 : memref<!tpu.dma_semaphore, #tpu.memory_space<semaphore_mem>>) src(%52 : memref<1x128xf32, #tpu.memory_space<any>>) dst(%53 : memref<1x128xf32, #tpu.memory_space<vmem>>)
    %c0_i32_41 = arith.constant 0 : i32
    %54 = tpu.memref_slice %arg3[%9, %c0_i32_41] : memref<64x128xf32, #tpu.memory_space<any>> -> memref<1x128xf32, #tpu.memory_space<any>>
    %c3_i32_42 = arith.constant 3 : i32
    %c0_i32_43 = arith.constant 0 : i32
    %55 = tpu.memref_slice %arg9[%c3_i32_42, %c0_i32_43] : memref<16x128xf32, #tpu.memory_space<vmem>> -> memref<1x128xf32, #tpu.memory_space<vmem>>
    tpu.wait_dma2 semaphore(%arg10 : memref<!tpu.dma_semaphore, #tpu.memory_space<semaphore_mem>>) src(%54 : memref<1x128xf32, #tpu.memory_space<any>>) dst(%55 : memref<1x128xf32, #tpu.memory_space<vmem>>)
    %c0_i32_44 = arith.constant 0 : i32
    %56 = tpu.memref_slice %arg3[%12, %c0_i32_44] : memref<64x128xf32, #tpu.memory_space<any>> -> memref<1x128xf32, #tpu.memory_space<any>>
    %c4_i32_45 = arith.constant 4 : i32
    %c0_i32_46 = arith.constant 0 : i32
    %57 = tpu.memref_slice %arg9[%c4_i32_45, %c0_i32_46] : memref<16x128xf32, #tpu.memory_space<vmem>> -> memref<1x128xf32, #tpu.memory_space<vmem>>
    tpu.wait_dma2 semaphore(%arg10 : memref<!tpu.dma_semaphore, #tpu.memory_space<semaphore_mem>>) src(%56 : memref<1x128xf32, #tpu.memory_space<any>>) dst(%57 : memref<1x128xf32, #tpu.memory_space<vmem>>)
    %c0_i32_47 = arith.constant 0 : i32
    %58 = tpu.memref_slice %arg3[%15, %c0_i32_47] : memref<64x128xf32, #tpu.memory_space<any>> -> memref<1x128xf32, #tpu.memory_space<any>>
    %c5_i32_48 = arith.constant 5 : i32
    %c0_i32_49 = arith.constant 0 : i32
    %59 = tpu.memref_slice %arg9[%c5_i32_48, %c0_i32_49] : memref<16x128xf32, #tpu.memory_space<vmem>> -> memref<1x128xf32, #tpu.memory_space<vmem>>
    tpu.wait_dma2 semaphore(%arg10 : memref<!tpu.dma_semaphore, #tpu.memory_space<semaphore_mem>>) src(%58 : memref<1x128xf32, #tpu.memory_space<any>>) dst(%59 : memref<1x128xf32, #tpu.memory_space<vmem>>)
    %c0_i32_50 = arith.constant 0 : i32
    %60 = tpu.memref_slice %arg3[%18, %c0_i32_50] : memref<64x128xf32, #tpu.memory_space<any>> -> memref<1x128xf32, #tpu.memory_space<any>>
    %c6_i32_51 = arith.constant 6 : i32
    %c0_i32_52 = arith.constant 0 : i32
    %61 = tpu.memref_slice %arg9[%c6_i32_51, %c0_i32_52] : memref<16x128xf32, #tpu.memory_space<vmem>> -> memref<1x128xf32, #tpu.memory_space<vmem>>
    tpu.wait_dma2 semaphore(%arg10 : memref<!tpu.dma_semaphore, #tpu.memory_space<semaphore_mem>>) src(%60 : memref<1x128xf32, #tpu.memory_space<any>>) dst(%61 : memref<1x128xf32, #tpu.memory_space<vmem>>)
    %c0_i32_53 = arith.constant 0 : i32
    %62 = tpu.memref_slice %arg3[%21, %c0_i32_53] : memref<64x128xf32, #tpu.memory_space<any>> -> memref<1x128xf32, #tpu.memory_space<any>>
    %c7_i32_54 = arith.constant 7 : i32
    %c0_i32_55 = arith.constant 0 : i32
    %63 = tpu.memref_slice %arg9[%c7_i32_54, %c0_i32_55] : memref<16x128xf32, #tpu.memory_space<vmem>> -> memref<1x128xf32, #tpu.memory_space<vmem>>
    tpu.wait_dma2 semaphore(%arg10 : memref<!tpu.dma_semaphore, #tpu.memory_space<semaphore_mem>>) src(%62 : memref<1x128xf32, #tpu.memory_space<any>>) dst(%63 : memref<1x128xf32, #tpu.memory_space<vmem>>)
    %c0_i32_56 = arith.constant 0 : i32
    %64 = tpu.memref_slice %arg3[%24, %c0_i32_56] : memref<64x128xf32, #tpu.memory_space<any>> -> memref<1x128xf32, #tpu.memory_space<any>>
    %c8_i32_57 = arith.constant 8 : i32
    %c0_i32_58 = arith.constant 0 : i32
    %65 = tpu.memref_slice %arg9[%c8_i32_57, %c0_i32_58] : memref<16x128xf32, #tpu.memory_space<vmem>> -> memref<1x128xf32, #tpu.memory_space<vmem>>
    tpu.wait_dma2 semaphore(%arg10 : memref<!tpu.dma_semaphore, #tpu.memory_space<semaphore_mem>>) src(%64 : memref<1x128xf32, #tpu.memory_space<any>>) dst(%65 : memref<1x128xf32, #tpu.memory_space<vmem>>)
    %c0_i32_59 = arith.constant 0 : i32
    %66 = tpu.memref_slice %arg3[%27, %c0_i32_59] : memref<64x128xf32, #tpu.memory_space<any>> -> memref<1x128xf32, #tpu.memory_space<any>>
    %c9_i32_60 = arith.constant 9 : i32
    %c0_i32_61 = arith.constant 0 : i32
    %67 = tpu.memref_slice %arg9[%c9_i32_60, %c0_i32_61] : memref<16x128xf32, #tpu.memory_space<vmem>> -> memref<1x128xf32, #tpu.memory_space<vmem>>
    tpu.wait_dma2 semaphore(%arg10 : memref<!tpu.dma_semaphore, #tpu.memory_space<semaphore_mem>>) src(%66 : memref<1x128xf32, #tpu.memory_space<any>>) dst(%67 : memref<1x128xf32, #tpu.memory_space<vmem>>)
    %c0_i32_62 = arith.constant 0 : i32
    %68 = tpu.memref_slice %arg3[%30, %c0_i32_62] : memref<64x128xf32, #tpu.memory_space<any>> -> memref<1x128xf32, #tpu.memory_space<any>>
    %c10_i32_63 = arith.constant 10 : i32
    %c0_i32_64 = arith.constant 0 : i32
    %69 = tpu.memref_slice %arg9[%c10_i32_63, %c0_i32_64] : memref<16x128xf32, #tpu.memory_space<vmem>> -> memref<1x128xf32, #tpu.memory_space<vmem>>
    tpu.wait_dma2 semaphore(%arg10 : memref<!tpu.dma_semaphore, #tpu.memory_space<semaphore_mem>>) src(%68 : memref<1x128xf32, #tpu.memory_space<any>>) dst(%69 : memref<1x128xf32, #tpu.memory_space<vmem>>)
    %c0_i32_65 = arith.constant 0 : i32
    %70 = tpu.memref_slice %arg3[%33, %c0_i32_65] : memref<64x128xf32, #tpu.memory_space<any>> -> memref<1x128xf32, #tpu.memory_space<any>>
    %c11_i32_66 = arith.constant 11 : i32
    %c0_i32_67 = arith.constant 0 : i32
    %71 = tpu.memref_slice %arg9[%c11_i32_66, %c0_i32_67] : memref<16x128xf32, #tpu.memory_space<vmem>> -> memref<1x128xf32, #tpu.memory_space<vmem>>
    tpu.wait_dma2 semaphore(%arg10 : memref<!tpu.dma_semaphore, #tpu.memory_space<semaphore_mem>>) src(%70 : memref<1x128xf32, #tpu.memory_space<any>>) dst(%71 : memref<1x128xf32, #tpu.memory_space<vmem>>)
    %c0_i32_68 = arith.constant 0 : i32
    %72 = tpu.memref_slice %arg3[%36, %c0_i32_68] : memref<64x128xf32, #tpu.memory_space<any>> -> memref<1x128xf32, #tpu.memory_space<any>>
    %c12_i32_69 = arith.constant 12 : i32
    %c0_i32_70 = arith.constant 0 : i32
    %73 = tpu.memref_slice %arg9[%c12_i32_69, %c0_i32_70] : memref<16x128xf32, #tpu.memory_space<vmem>> -> memref<1x128xf32, #tpu.memory_space<vmem>>
    tpu.wait_dma2 semaphore(%arg10 : memref<!tpu.dma_semaphore, #tpu.memory_space<semaphore_mem>>) src(%72 : memref<1x128xf32, #tpu.memory_space<any>>) dst(%73 : memref<1x128xf32, #tpu.memory_space<vmem>>)
    %c0_i32_71 = arith.constant 0 : i32
    %74 = tpu.memref_slice %arg3[%39, %c0_i32_71] : memref<64x128xf32, #tpu.memory_space<any>> -> memref<1x128xf32, #tpu.memory_space<any>>
    %c13_i32_72 = arith.constant 13 : i32
    %c0_i32_73 = arith.constant 0 : i32
    %75 = tpu.memref_slice %arg9[%c13_i32_72, %c0_i32_73] : memref<16x128xf32, #tpu.memory_space<vmem>> -> memref<1x128xf32, #tpu.memory_space<vmem>>
    tpu.wait_dma2 semaphore(%arg10 : memref<!tpu.dma_semaphore, #tpu.memory_space<semaphore_mem>>) src(%74 : memref<1x128xf32, #tpu.memory_space<any>>) dst(%75 : memref<1x128xf32, #tpu.memory_space<vmem>>)
    %c0_i32_74 = arith.constant 0 : i32
    %76 = tpu.memref_slice %arg3[%42, %c0_i32_74] : memref<64x128xf32, #tpu.memory_space<any>> -> memref<1x128xf32, #tpu.memory_space<any>>
    %c14_i32_75 = arith.constant 14 : i32
    %c0_i32_76 = arith.constant 0 : i32
    %77 = tpu.memref_slice %arg9[%c14_i32_75, %c0_i32_76] : memref<16x128xf32, #tpu.memory_space<vmem>> -> memref<1x128xf32, #tpu.memory_space<vmem>>
    tpu.wait_dma2 semaphore(%arg10 : memref<!tpu.dma_semaphore, #tpu.memory_space<semaphore_mem>>) src(%76 : memref<1x128xf32, #tpu.memory_space<any>>) dst(%77 : memref<1x128xf32, #tpu.memory_space<vmem>>)
    %c0_i32_77 = arith.constant 0 : i32
    %78 = tpu.memref_slice %arg3[%45, %c0_i32_77] : memref<64x128xf32, #tpu.memory_space<any>> -> memref<1x128xf32, #tpu.memory_space<any>>
    %c15_i32_78 = arith.constant 15 : i32
    %c0_i32_79 = arith.constant 0 : i32
    %79 = tpu.memref_slice %arg9[%c15_i32_78, %c0_i32_79] : memref<16x128xf32, #tpu.memory_space<vmem>> -> memref<1x128xf32, #tpu.memory_space<vmem>>
    tpu.wait_dma2 semaphore(%arg10 : memref<!tpu.dma_semaphore, #tpu.memory_space<semaphore_mem>>) src(%78 : memref<1x128xf32, #tpu.memory_space<any>>) dst(%79 : memref<1x128xf32, #tpu.memory_space<vmem>>)
    %80 = tpu.iota {dimensions = array<i32: 1>} : vector<8x16xi32>
    %81 = tpu.iota {dimensions = array<i32: 0>} : vector<8x16xi32>
    %c8_i32_80 = arith.constant 8 : i32
    %82 = vector.broadcast %c8_i32_80 : i32 to vector<8x16xi32>
    %83 = arith.muli %81, %82 : vector<8x16xi32>
    %84 = arith.subi %80, %83 : vector<8x16xi32>
    %c0_i32_81 = arith.constant 0 : i32
    %85 = vector.broadcast %c0_i32_81 : i32 to vector<8x16xi32>
    %86 = arith.cmpi sge, %84, %85 : vector<8x16xi32>
    %c8_i32_82 = arith.constant 8 : i32
    %87 = vector.broadcast %c8_i32_82 : i32 to vector<8x16xi32>
    %88 = arith.cmpi slt, %84, %87 : vector<8x16xi32>
    %89 = arith.andi %86, %88 : vector<8x16xi1>
    %c0_83 = arith.constant 0 : index
    %c0_84 = arith.constant 0 : index
    %90 = vector.load %arg1[%c0_83, %c0_84] : memref<1x16xf32, #tpu.memory_space<vmem>>, vector<1x16xf32>
    %cst = arith.constant 0.000000e+00 : f32
    %91 = vector.shape_cast %90 : vector<1x16xf32> to vector<1x16xf32>
    %92 = vector.broadcast %91 : vector<1x16xf32> to vector<8x16xf32>
    %93 = vector.broadcast %cst : f32 to vector<8x16xf32>
    %94 = arith.select %89, %92, %93 : vector<8x16xi1>, vector<8x16xf32>
    %c0_85 = arith.constant 0 : index
    %c0_86 = arith.constant 0 : index
    %95 = vector.load %arg9[%c0_85, %c0_86] : memref<16x128xf32, #tpu.memory_space<vmem>>, vector<16x128xf32>
    %cst_87 = arith.constant dense<0.000000e+00> : vector<8x128xf32>
    %96 = tpu.matmul %94, %95, %cst_87 {dimension_numbers = #tpu.dot_dimension_numbers<[1], [0], [0], [1], [0, 0, 1, 1], [], []>} : vector<8x16xf32>, vector<16x128xf32>, vector<8x128xf32> -> vector<8x128xf32>
    %c0_88 = arith.constant 0 : index
    %c0_89 = arith.constant 0 : index
    %97 = vector.load %arg2[%c0_88, %c0_89] : memref<8x1xf32, #tpu.memory_space<vmem>>, vector<8x1xf32>
    %98 = tpu.reciprocal %97 {approx = true} : vector<8x1xf32> -> vector<8x1xf32>
    %99 = vector.broadcast %98 : vector<8x1xf32> to vector<8x128xf32>
    %100 = arith.mulf %96, %99 : vector<8x128xf32>
    %101 = arith.truncf %100 : vector<8x128xf32> to vector<8x128xbf16>
    %c0_90 = arith.constant 0 : index
    %c0_91 = arith.constant 0 : index
    %102 = vector.load %arg4[%c0_90, %c0_91] : memref<128x128xbf16, #tpu.memory_space<vmem>>, vector<128x128xbf16>
    %cst_92 = arith.constant dense<0.000000e+00> : vector<8x128xf32>
    %103 = tpu.matmul %101, %102, %cst_92 {dimension_numbers = #tpu.dot_dimension_numbers<[1], [0], [0], [1], [0, 0, 1, 1], [], []>} : vector<8x128xbf16>, vector<128x128xbf16>, vector<8x128xf32> -> vector<8x128xf32>
    %c0_93 = arith.constant 0 : index
    %c0_94 = arith.constant 0 : index
    %104 = vector.load %arg5[%c0_93, %c0_94] : memref<1x128xf32, #tpu.memory_space<vmem>>, vector<1x128xf32>
    %105 = vector.broadcast %104 : vector<1x128xf32> to vector<8x128xf32>
    %106 = arith.addf %103, %105 : vector<8x128xf32>
    %107 = math.tanh %106 : vector<8x128xf32>
    %108 = arith.truncf %107 : vector<8x128xf32> to vector<8x128xbf16>
    %c0_95 = arith.constant 0 : index
    %c0_96 = arith.constant 0 : index
    %109 = vector.load %arg6[%c0_95, %c0_96] : memref<128x128xbf16, #tpu.memory_space<vmem>>, vector<128x128xbf16>
    %cst_97 = arith.constant dense<0.000000e+00> : vector<8x128xf32>
    %110 = tpu.matmul %108, %109, %cst_97 {dimension_numbers = #tpu.dot_dimension_numbers<[1], [0], [0], [1], [0, 0, 1, 1], [], []>} : vector<8x128xbf16>, vector<128x128xbf16>, vector<8x128xf32> -> vector<8x128xf32>
    %c0_98 = arith.constant 0 : index
    %c0_99 = arith.constant 0 : index
    %111 = vector.load %arg7[%c0_98, %c0_99] : memref<1x128xf32, #tpu.memory_space<vmem>>, vector<1x128xf32>
    %112 = vector.broadcast %111 : vector<1x128xf32> to vector<8x128xf32>
    %113 = arith.addf %110, %112 : vector<8x128xf32>
    %c0_100 = arith.constant 0 : index
    %c0_101 = arith.constant 0 : index
    %114 = vector.load %arg8[%c0_100, %c0_101] : memref<8x128xf32, #tpu.memory_space<vmem>>, vector<8x128xf32>
    tpu.vector_store %arg8[%c0_100, %c0_101], %113 {strides = array<i32>} : memref<8x128xf32, #tpu.memory_space<vmem>>, vector<8x128xf32>,
    return
  }
}

</mosaic_0001>

<llo_original>
// kernel: lora_classifier_forward.1
$region0: #{lora_classifier_forward.1}
  #allocation0 [shape = 'u32[]', space=smem, size = 0x4, offset = 0x4, fixed_abs, tag = 'smem constant byte address 0x4 - core index']
  #allocation1 [shape = 'u32[144,128]{1,0:T(1,128)}', space=vmem, size = 0x12000, scoped, tag = 'internal scratch']
  #allocation2 [shape = 'f32[16,128]{1,0:T(8,128)}', space=vmem, size = 0x2000, scoped, tag = 'scratch operand']
  #allocation3 [shape = 's32[1]{0}', space=sflag, size = 0x4, scoped, tag = 'scratch operand']
  #allocation10 [shape = 's32[]', space=sflag, size = 0x4, offset = 0, fixed_abs, tag = 'sflag constant byte address 0x0 - dummy sync flag']
  #allocation11 [shape = 's32[]', space=sflag, size = 0x4, offset = 0, fixed_abs, tag = 'sflag constant byte address 0x0 - dummy sync flag']
  #allocation12 [shape = 'u32[]', space=smem, size = 0x4, offset = 0x44, fixed_abs, tag = 'smem constant byte address 0x44 - assertion arg 0']
  #allocation13 [shape = 'u32[]', space=smem, size = 0x4, offset = 0x48, fixed_abs, tag = 'smem constant byte address 0x48 - assertion arg 1']
  #allocation14 [shape = 's32[]', space=sflag, size = 0x4, offset = 0, fixed_abs, tag = 'sflag constant byte address 0x0 - dummy sync flag']
  #allocation15 [shape = 's32[]', space=sflag, size = 0x4, offset = 0, fixed_abs, tag = 'sflag constant byte address 0x0 - dummy sync flag']
  #allocation16 [shape = 's32[]', space=sflag, size = 0x4, offset = 0, fixed_abs, tag = 'sflag constant byte address 0x0 - dummy sync flag']
  #allocation17 [shape = 's32[]', space=sflag, size = 0x4, offset = 0, fixed_abs, tag = 'sflag constant byte address 0x0 - dummy sync flag']
  #allocation18 [shape = 's32[]', space=sflag, size = 0x4, offset = 0, fixed_abs, tag = 'sflag constant byte address 0x0 - dummy sync flag']
  #allocation19 [shape = 's32[]', space=sflag, size = 0x4, offset = 0, fixed_abs, tag = 'sflag constant byte address 0x0 - dummy sync flag']
  #allocation20 [shape = 's32[]', space=sflag, size = 0x4, offset = 0, fixed_abs, tag = 'sflag constant byte address 0x0 - dummy sync flag']
  #allocation21 [shape = 's32[]', space=sflag, size = 0x4, offset = 0, fixed_abs, tag = 'sflag constant byte address 0x0 - dummy sync flag']
  #allocation22 [shape = 's32[]', space=sflag, size = 0x4, offset = 0, fixed_abs, tag = 'sflag constant byte address 0x0 - dummy sync flag']
  #allocation23 [shape = 's32[]', space=sflag, size = 0x4, offset = 0, fixed_abs, tag = 'sflag constant byte address 0x0 - dummy sync flag']
  #allocation24 [shape = 's32[]', space=sflag, size = 0x4, offset = 0, fixed_abs, tag = 'sflag constant byte address 0x0 - dummy sync flag']
  #allocation25 [shape = 's32[]', space=sflag, size = 0x4, offset = 0, fixed_abs, tag = 'sflag constant byte address 0x0 - dummy sync flag']
  #allocation26 [shape = 's32[]', space=sflag, size = 0x4, offset = 0, fixed_abs, tag = 'sflag constant byte address 0x0 - dummy sync flag']
  #allocation27 [shape = 's32[]', space=sflag, size = 0x4, offset = 0, fixed_abs, tag = 'sflag constant byte address 0x0 - dummy sync flag']
  #allocation28 [shape = 's32[]', space=sflag, size = 0x4, offset = 0, fixed_abs, tag = 'sflag constant byte address 0x0 - dummy sync flag']
  #allocation29 [shape = 's32[]', space=sflag, size = 0x4, offset = 0, fixed_abs, tag = 'sflag constant byte address 0x0 - dummy sync flag']
  #allocation30 [shape = 's32[]', space=sflag, size = 0x4, offset = 0, fixed_abs, tag = 'sflag constant byte address 0x0 - dummy sync flag']
  #allocation31 [shape = 's32[]', space=sflag, size = 0x4, offset = 0, fixed_abs, tag = 'sflag constant byte address 0x0 - dummy sync flag']
  #allocation32 [shape = 's32[]', space=sflag, size = 0x4, offset = 0, fixed_abs, tag = 'sflag constant byte address 0x0 - dummy sync flag']
  #allocation33 [shape = 's32[]', space=sflag, size = 0x4, offset = 0, fixed_abs, tag = 'sflag constant byte address 0x0 - dummy sync flag']
  #allocation34 [shape = 's32[]', space=sflag, size = 0x4, offset = 0, fixed_abs, tag = 'sflag constant byte address 0x0 - dummy sync flag']
  #allocation35 [shape = 's32[]', space=sflag, size = 0x4, offset = 0, fixed_abs, tag = 'sflag constant byte address 0x0 - dummy sync flag']
  #allocation36 [shape = 's32[]', space=sflag, size = 0x4, offset = 0, fixed_abs, tag = 'sflag constant byte address 0x0 - dummy sync flag']
  #allocation37 [shape = 's32[]', space=sflag, size = 0x4, offset = 0, fixed_abs, tag = 'sflag constant byte address 0x0 - dummy sync flag']
  #allocation38 [shape = 's32[]', space=sflag, size = 0x4, offset = 0, fixed_abs, tag = 'sflag constant byte address 0x0 - dummy sync flag']
  #allocation39 [shape = 's32[]', space=sflag, size = 0x4, offset = 0, fixed_abs, tag = 'sflag constant byte address 0x0 - dummy sync flag']
  #allocation40 [shape = 's32[]', space=sflag, size = 0x4, offset = 0, fixed_abs, tag = 'sflag constant byte address 0x0 - dummy sync flag']
  #allocation41 [shape = 's32[]', space=sflag, size = 0x4, offset = 0, fixed_abs, tag = 'sflag constant byte address 0x0 - dummy sync flag']
  #allocation42 [shape = 's32[]', space=sflag, size = 0x4, offset = 0, fixed_abs, tag = 'sflag constant byte address 0x0 - dummy sync flag']
  #allocation43 [shape = 's32[]', space=sflag, size = 0x4, offset = 0, fixed_abs, tag = 'sflag constant byte address 0x0 - dummy sync flag']
  %s0 = inlined_call_operand.vmem [shape: s32[16], index: 0, kind: input, shape index: {}]
  %s1 = inlined_call_operand.vmem [shape: f32[1,16], index: 1, kind: input, shape index: {}]
  %s2 = inlined_call_operand.vmem [shape: f32[8,1], index: 2, kind: input, shape index: {}]
  %s3 = inlined_call_operand.hbm [shape: f32[64,128], index: 3, kind: input, shape index: {}]
  %s4 = inlined_call_operand.hbm [shape: bf16[128,128], index: 4, kind: input, shape index: {}]
  %s5 = inlined_call_operand.vmem [shape: f32[1,128], index: 5, kind: input, shape index: {}]
  %s6 = inlined_call_operand.hbm [shape: bf16[128,128], index: 6, kind: input, shape index: {}]
  %s7 = inlined_call_operand.vmem [shape: f32[1,128], index: 7, kind: input, shape index: {}]
  %s8 = inlined_call_operand.vmem [shape: f32[8,128], index: 8, kind: output, shape index: {}]
  %s9 = sld [smem:[#allocation0]]
  $region114: #{lora_classifier_forward.1} parent=0
    _
  %s11 = ssub.s32 1, %s9
  %s12 = scalar_select 0, %s11, %s9
  $region1: #{lora_classifier_forward.1} parent=0
    #allocation4 [shape = 'u8[512]{0}', space=smem, size = 0x200, scoped, tag = 'input window, operand 0, single buffered']
    #allocation5 [shape = 's32[1]{0}', space=sflag, size = 0x4, scoped, tag = 'scoped memory for lora_classifier_forward.1']
    #allocation6 [shape = 's32[1]{0}', space=sflag, size = 0x4, scoped, tag = 'scoped memory for lora_classifier_forward.1']
    #allocation7 [shape = 'u8[32768]{0}', space=vmem, size = 0x8000, scoped, tag = 'input window, operand 4, single buffered']
    #allocation8 [shape = 'u8[32768]{0}', space=vmem, size = 0x8000, scoped, tag = 'input window, operand 6, single buffered']
    #allocation9 [shape = 's32[1]{0}', space=sflag, size = 0x4, scoped, tag = 'scoped memory for lora_classifier_forward.1']
    %13 = vsyncpa [#allocation6], 0
    %14 = vsyncpa [#allocation5], 0
    %15 = vsyncpa [#allocation9], 0
    // Predicated region
    $region2: #{lora_classifier_forward.1} parent=1 // pred_check
      _
    $region3: #{lora_classifier_forward.1} parent=1 // pred_check_branch
      %17 = sbr.rel (0) target = $region5
    $region4: #{lora_classifier_forward.1} parent=1 // pred_region
      %s19 = ssub.s32 16, 16
      %20 = vsyncadd [#allocation6], %s19
      %s22 = sshll.u32 %s0, 4
      %s23 = int_to_ptr.vmem [resolvable:$true] %s22
      %25 = dma.vmem_to_smem %s23, 16, [#allocation4], [#allocation6]
    $region5: #{lora_classifier_forward.1} parent=1 // pred_fallthru
      _
    // Predicated region
    $region6: #{lora_classifier_forward.1} parent=1 // pred_check
      _
    $region7: #{lora_classifier_forward.1} parent=1 // pred_check_branch
      %27 = sbr.rel (0) target = $region9
    $region8: #{lora_classifier_forward.1} parent=1 // pred_region
      _
    $region9: #{lora_classifier_forward.1} parent=1 // pred_fallthru
      _
    // Predicated region
    $region10: #{lora_classifier_forward.1} parent=1 // pred_check
      _
    $region11: #{lora_classifier_forward.1} parent=1 // pred_check_branch
      %29 = sbr.rel (0) target = $region13
    $region12: #{lora_classifier_forward.1} parent=1 // pred_region
      _
    $region13: #{lora_classifier_forward.1} parent=1 // pred_fallthru
      _
    // Predicated region
    $region14: #{lora_classifier_forward.1} parent=1 // pred_check
      _
    $region15: #{lora_classifier_forward.1} parent=1 // pred_check_branch
      %31 = sbr.rel (0) target = $region17
    $region16: #{lora_classifier_forward.1} parent=1 // pred_region
      %s33 = ssub.s32 1024, 1024
      %34 = vsyncadd [#allocation5], %s33
      %s35 = sshll.u32 [#allocation7], 4
      %s36 = int_to_ptr.vmem [resolvable:$true] %s35
      %41 = dma.hbm_to_vmem [thread:$0]  %s4, 1024, %s36, [#allocation5], 64, 64, 4
    $region17: #{lora_classifier_forward.1} parent=1 // pred_fallthru
      _
    // Predicated region
    $region18: #{lora_classifier_forward.1} parent=1 // pred_check
      _
    $region19: #{lora_classifier_forward.1} parent=1 // pred_check_branch
      %43 = sbr.rel (0) target = $region21
    $region20: #{lora_classifier_forward.1} parent=1 // pred_region
      _
    $region21: #{lora_classifier_forward.1} parent=1 // pred_fallthru
      _
    // Predicated region
    $region22: #{lora_classifier_forward.1} parent=1 // pred_check
      _
    $region23: #{lora_classifier_forward.1} parent=1 // pred_check_branch
      %45 = sbr.rel (0) target = $region25
    $region24: #{lora_classifier_forward.1} parent=1 // pred_region
      %s47 = ssub.s32 1024, 1024
      %48 = vsyncadd [#allocation9], %s47
      %s49 = sshll.u32 [#allocation8], 4
      %s50 = int_to_ptr.vmem [resolvable:$true] %s49
      %55 = dma.hbm_to_vmem [thread:$0]  %s6, 1024, %s50, [#allocation9], 64, 64, 4
    $region25: #{lora_classifier_forward.1} parent=1 // pred_fallthru
      _
    // Predicated region
    $region26: #{lora_classifier_forward.1} parent=1 // pred_check
      _
    $region27: #{lora_classifier_forward.1} parent=1 // pred_check_branch
      %57 = sbr.rel (0) target = $region29
    $region28: #{lora_classifier_forward.1} parent=1 // pred_region
      _
    $region29: #{lora_classifier_forward.1} parent=1 // pred_fallthru
      _
    // Predicated region
    $region30: #{lora_classifier_forward.1} parent=1 // pred_check
      _
    $region31: #{lora_classifier_forward.1} parent=1 // pred_check_branch
      %59 = sbr.rel (0) target = $region33
    $region32: #{lora_classifier_forward.1} parent=1 // pred_region
      %60 = dma.done [#allocation6], 16
    $region33: #{lora_classifier_forward.1} parent=1 // pred_fallthru
      _
    // Predicated region
    $region34: #{lora_classifier_forward.1} parent=1 // pred_check
      _
    $region35: #{lora_classifier_forward.1} parent=1 // pred_check_branch
      %62 = sbr.rel (0) target = $region37
    $region36: #{lora_classifier_forward.1} parent=1 // pred_region
      %63 = dma.done [#allocation5], 1024
    $region37: #{lora_classifier_forward.1} parent=1 // pred_fallthru
      _
    // Predicated region
    $region38: #{lora_classifier_forward.1} parent=1 // pred_check
      _
    $region39: #{lora_classifier_forward.1} parent=1 // pred_check_branch
      %65 = sbr.rel (0) target = $region41
    $region40: #{lora_classifier_forward.1} parent=1 // pred_region
      %66 = dma.done [#allocation9], 1024
    $region41: #{lora_classifier_forward.1} parent=1 // pred_fallthru
      _
    %67 = sfence
    %s69 = sld [smem:[#allocation4]]
    %s70 = smul.addr %s69, 16
    %s71 = scalar_lea.hbm %s3, %s70
    // Predicated region
    $region42: #{lora_classifier_forward.1} parent=1 // pred_check
      _
    $region43: #{lora_classifier_forward.1} parent=1 // pred_check_branch
      %73 = sbr.rel target = $region45
    $region44: #{lora_classifier_forward.1} parent=1 // pred_region
      %74 = sst [smem:[#allocation12]] [#allocation11]
      %75 = sst [smem:[#allocation13]] [#allocation10]
    $region45: #{lora_classifier_forward.1} parent=1 // pred_fallthru
      _
    %77 = shalt.err (0)
    %s79 = sshll.u32 [#allocation2], 4
    %s80 = int_to_ptr.vmem [resolvable:$true] %s79
    %82 = dma.hbm_to_vmem [thread:$0]  %s71, 16, %s80, [#allocation3]
    %s83 = sld [smem:[#allocation4 + $0x1]]
    %s84 = smul.addr %s83, 16
    %s85 = scalar_lea.hbm %s3, %s84
    %s86 = scalar_lea.vmem [#allocation2], 1
    // Predicated region
    $region46: #{lora_classifier_forward.1} parent=1 // pred_check
      _
    $region47: #{lora_classifier_forward.1} parent=1 // pred_check_branch
      %88 = sbr.rel target = $region49
    $region48: #{lora_classifier_forward.1} parent=1 // pred_region
      %89 = sst [smem:[#allocation12]] [#allocation15]
      %90 = sst [smem:[#allocation13]] [#allocation14]
    $region49: #{lora_classifier_forward.1} parent=1 // pred_fallthru
      _
    %92 = shalt.err (0)
    %s94 = sshll.u32 %s86, 4
    %s95 = int_to_ptr.vmem [resolvable:$true] %s94
    %97 = dma.hbm_to_vmem [thread:$0]  %s85, 16, %s95, [#allocation3]
    %s98 = sld [smem:[#allocation4 + $0x2]]
    %s99 = smul.addr %s98, 16
    %s100 = scalar_lea.hbm %s3, %s99
    %s101 = scalar_lea.vmem [#allocation2], 2
    // Predicated region
    $region50: #{lora_classifier_forward.1} parent=1 // pred_check
      _
    $region51: #{lora_classifier_forward.1} parent=1 // pred_check_branch
      %103 = sbr.rel target = $region53
    $region52: #{lora_classifier_forward.1} parent=1 // pred_region
      %104 = sst [smem:[#allocation12]] [#allocation17]
      %105 = sst [smem:[#allocation13]] [#allocation16]
    $region53: #{lora_classifier_forward.1} parent=1 // pred_fallthru
      _
    %107 = shalt.err (0)
    %s109 = sshll.u32 %s101, 4
    %s110 = int_to_ptr.vmem [resolvable:$true] %s109
    %112 = dma.hbm_to_vmem [thread:$0]  %s100, 16, %s110, [#allocation3]
    %s113 = sld [smem:[#allocation4 + $0x3]]
    %s114 = smul.addr %s113, 16
    %s115 = scalar_lea.hbm %s3, %s114
    %s116 = scalar_lea.vmem [#allocation2], 3
    // Predicated region
    $region54: #{lora_classifier_forward.1} parent=1 // pred_check
      _
    $region55: #{lora_classifier_forward.1} parent=1 // pred_check_branch
      %118 = sbr.rel target = $region57
    $region56: #{lora_classifier_forward.1} parent=1 // pred_region
      %119 = sst [smem:[#allocation12]] [#allocation19]
      %120 = sst [smem:[#allocation13]] [#allocation18]
    $region57: #{lora_classifier_forward.1} parent=1 // pred_fallthru
      _
    %122 = shalt.err (0)
    %s124 = sshll.u32 %s116, 4
    %s125 = int_to_ptr.vmem [resolvable:$true] %s124
    %127 = dma.hbm_to_vmem [thread:$0]  %s115, 16, %s125, [#allocation3]
    %s128 = sld [smem:[#allocation4 + $0x4]]
    %s129 = smul.addr %s128, 16
    %s130 = scalar_lea.hbm %s3, %s129
    %s131 = scalar_lea.vmem [#allocation2], 4
    // Predicated region
    $region58: #{lora_classifier_forward.1} parent=1 // pred_check
      _
    $region59: #{lora_classifier_forward.1} parent=1 // pred_check_branch
      %133 = sbr.rel target = $region61
    $region60: #{lora_classifier_forward.1} parent=1 // pred_region
      %134 = sst [smem:[#allocation12]] [#allocation21]
      %135 = sst [smem:[#allocation13]] [#allocation20]
    $region61: #{lora_classifier_forward.1} parent=1 // pred_fallthru
      _
    %137 = shalt.err (0)
    %s139 = sshll.u32 %s131, 4
    %s140 = int_to_ptr.vmem [resolvable:$true] %s139
    %142 = dma.hbm_to_vmem [thread:$0]  %s130, 16, %s140, [#allocation3]
    %s143 = sld [smem:[#allocation4 + $0x5]]
    %s144 = smul.addr %s143, 16
    %s145 = scalar_lea.hbm %s3, %s144
    %s146 = scalar_lea.vmem [#allocation2], 5
    // Predicated region
    $region62: #{lora_classifier_forward.1} parent=1 // pred_check
      _
    $region63: #{lora_classifier_forward.1} parent=1 // pred_check_branch
      %148 = sbr.rel target = $region65
    $region64: #{lora_classifier_forward.1} parent=1 // pred_region
      %149 = sst [smem:[#allocation12]] [#allocation23]
      %150 = sst [smem:[#allocation13]] [#allocation22]
    $region65: #{lora_classifier_forward.1} parent=1 // pred_fallthru
      _
    %152 = shalt.err (0)
    %s154 = sshll.u32 %s146, 4
    %s155 = int_to_ptr.vmem [resolvable:$true] %s154
    %157 = dma.hbm_to_vmem [thread:$0]  %s145, 16, %s155, [#allocation3]
    %s158 = sld [smem:[#allocation4 + $0x6]]
    %s159 = smul.addr %s158, 16
    %s160 = scalar_lea.hbm %s3, %s159
    %s161 = scalar_lea.vmem [#allocation2], 6
    // Predicated region
    $region66: #{lora_classifier_forward.1} parent=1 // pred_check
      _
    $region67: #{lora_classifier_forward.1} parent=1 // pred_check_branch
      %163 = sbr.rel target = $region69
    $region68: #{lora_classifier_forward.1} parent=1 // pred_region
      %164 = sst [smem:[#allocation12]] [#allocation25]
      %165 = sst [smem:[#allocation13]] [#allocation24]
    $region69: #{lora_classifier_forward.1} parent=1 // pred_fallthru
      _
    %167 = shalt.err (0)
    %s169 = sshll.u32 %s161, 4
    %s170 = int_to_ptr.vmem [resolvable:$true] %s169
    %172 = dma.hbm_to_vmem [thread:$0]  %s160, 16, %s170, [#allocation3]
    %s173 = sld [smem:[#allocation4 + $0x7]]
    %s174 = smul.addr %s173, 16
    %s175 = scalar_lea.hbm %s3, %s174
    %s176 = scalar_lea.vmem [#allocation2], 7
    // Predicated region
    $region70: #{lora_classifier_forward.1} parent=1 // pred_check
      _
    $region71: #{lora_classifier_forward.1} parent=1 // pred_check_branch
      %178 = sbr.rel target = $region73
    $region72: #{lora_classifier_forward.1} parent=1 // pred_region
      %179 = sst [smem:[#allocation12]] [#allocation27]
      %180 = sst [smem:[#allocation13]] [#allocation26]
    $region73: #{lora_classifier_forward.1} parent=1 // pred_fallthru
      _
    %182 = shalt.err (0)
    %s184 = sshll.u32 %s176, 4
    %s185 = int_to_ptr.vmem [resolvable:$true] %s184
    %187 = dma.hbm_to_vmem [thread:$0]  %s175, 16, %s185, [#allocation3]
    %s188 = sld [smem:[#allocation4 + $0x8]]
    %s189 = smul.addr %s188, 16
    %s190 = scalar_lea.hbm %s3, %s189
    %s191 = scalar_lea.vmem [#allocation2], 8
    // Predicated region
    $region74: #{lora_classifier_forward.1} parent=1 // pred_check
      _
    $region75: #{lora_classifier_forward.1} parent=1 // pred_check_branch
      %193 = sbr.rel target = $region77
    $region76: #{lora_classifier_forward.1} parent=1 // pred_region
      %194 = sst [smem:[#allocation12]] [#allocation29]
      %195 = sst [smem:[#allocation13]] [#allocation28]
    $region77: #{lora_classifier_forward.1} parent=1 // pred_fallthru
      _
    %197 = shalt.err (0)
    %s199 = sshll.u32 %s191, 4
    %s200 = int_to_ptr.vmem [resolvable:$true] %s199
    %202 = dma.hbm_to_vmem [thread:$0]  %s190, 16, %s200, [#allocation3]
    %s203 = sld [smem:[#allocation4 + $0x9]]
    %s204 = smul.addr %s203, 16
    %s205 = scalar_lea.hbm %s3, %s204
    %s206 = scalar_lea.vmem [#allocation2], 9
    // Predicated region
    $region78: #{lora_classifier_forward.1} parent=1 // pred_check
      _
    $region79: #{lora_classifier_forward.1} parent=1 // pred_check_branch
      %208 = sbr.rel target = $region81
    $region80: #{lora_classifier_forward.1} parent=1 // pred_region
      %209 = sst [smem:[#allocation12]] [#allocation31]
      %210 = sst [smem:[#allocation13]] [#allocation30]
    $region81: #{lora_classifier_forward.1} parent=1 // pred_fallthru
      _
    %212 = shalt.err (0)
    %s214 = sshll.u32 %s206, 4
    %s215 = int_to_ptr.vmem [resolvable:$true] %s214
    %217 = dma.hbm_to_vmem [thread:$0]  %s205, 16, %s215, [#allocation3]
    %s218 = sld [smem:[#allocation4 + $0xa]]
    %s219 = smul.addr %s218, 16
    %s220 = scalar_lea.hbm %s3, %s219
    %s221 = scalar_lea.vmem [#allocation2], 10
    // Predicated region
    $region82: #{lora_classifier_forward.1} parent=1 // pred_check
      _
    $region83: #{lora_classifier_forward.1} parent=1 // pred_check_branch
      %223 = sbr.rel target = $region85
    $region84: #{lora_classifier_forward.1} parent=1 // pred_region
      %224 = sst [smem:[#allocation12]] [#allocation33]
      %225 = sst [smem:[#allocation13]] [#allocation32]
    $region85: #{lora_classifier_forward.1} parent=1 // pred_fallthru
      _
    %227 = shalt.err (0)
    %s229 = sshll.u32 %s221, 4
    %s230 = int_to_ptr.vmem [resolvable:$true] %s229
    %232 = dma.hbm_to_vmem [thread:$0]  %s220, 16, %s230, [#allocation3]
    %s233 = sld [smem:[#allocation4 + $0xb]]
    %s234 = smul.addr %s233, 16
    %s235 = scalar_lea.hbm %s3, %s234
    %s236 = scalar_lea.vmem [#allocation2], 11
    // Predicated region
    $region86: #{lora_classifier_forward.1} parent=1 // pred_check
      _
    $region87: #{lora_classifier_forward.1} parent=1 // pred_check_branch
      %238 = sbr.rel target = $region89
    $region88: #{lora_classifier_forward.1} parent=1 // pred_region
      %239 = sst [smem:[#allocation12]] [#allocation35]
      %240 = sst [smem:[#allocation13]] [#allocation34]
    $region89: #{lora_classifier_forward.1} parent=1 // pred_fallthru
      _
    %242 = shalt.err (0)
    %s244 = sshll.u32 %s236, 4
    %s245 = int_to_ptr.vmem [resolvable:$true] %s244
    %247 = dma.hbm_to_vmem [thread:$0]  %s235, 16, %s245, [#allocation3]
    %s248 = sld [smem:[#allocation4 + $0xc]]
    %s249 = smul.addr %s248, 16
    %s250 = scalar_lea.hbm %s3, %s249
    %s251 = scalar_lea.vmem [#allocation2], 12
    // Predicated region
    $region90: #{lora_classifier_forward.1} parent=1 // pred_check
      _
    $region91: #{lora_classifier_forward.1} parent=1 // pred_check_branch
      %253 = sbr.rel target = $region93
    $region92: #{lora_classifier_forward.1} parent=1 // pred_region
      %254 = sst [smem:[#allocation12]] [#allocation37]
      %255 = sst [smem:[#allocation13]] [#allocation36]
    $region93: #{lora_classifier_forward.1} parent=1 // pred_fallthru
      _
    %257 = shalt.err (0)
    %s259 = sshll.u32 %s251, 4
    %s260 = int_to_ptr.vmem [resolvable:$true] %s259
    %262 = dma.hbm_to_vmem [thread:$0]  %s250, 16, %s260, [#allocation3]
    %s263 = sld [smem:[#allocation4 + $0xd]]
    %s264 = smul.addr %s263, 16
    %s265 = scalar_lea.hbm %s3, %s264
    %s266 = scalar_lea.vmem [#allocation2], 13
    // Predicated region
    $region94: #{lora_classifier_forward.1} parent=1 // pred_check
      _
    $region95: #{lora_classifier_forward.1} parent=1 // pred_check_branch
      %268 = sbr.rel target = $region97
    $region96: #{lora_classifier_forward.1} parent=1 // pred_region
      %269 = sst [smem:[#allocation12]] [#allocation39]
      %270 = sst [smem:[#allocation13]] [#allocation38]
    $region97: #{lora_classifier_forward.1} parent=1 // pred_fallthru
      _
    %272 = shalt.err (0)
    %s274 = sshll.u32 %s266, 4
    %s275 = int_to_ptr.vmem [resolvable:$true] %s274
    %277 = dma.hbm_to_vmem [thread:$0]  %s265, 16, %s275, [#allocation3]
    %s278 = sld [smem:[#allocation4 + $0xe]]
    %s279 = smul.addr %s278, 16
    %s280 = scalar_lea.hbm %s3, %s279
    %s281 = scalar_lea.vmem [#allocation2], 14
    // Predicated region
    $region98: #{lora_classifier_forward.1} parent=1 // pred_check
      _
    $region99: #{lora_classifier_forward.1} parent=1 // pred_check_branch
      %283 = sbr.rel target = $region101
    $region100: #{lora_classifier_forward.1} parent=1 // pred_region
      %284 = sst [smem:[#allocation12]] [#allocation41]
      %285 = sst [smem:[#allocation13]] [#allocation40]
    $region101: #{lora_classifier_forward.1} parent=1 // pred_fallthru
      _
    %287 = shalt.err (0)
    %s289 = sshll.u32 %s281, 4
    %s290 = int_to_ptr.vmem [resolvable:$true] %s289
    %292 = dma.hbm_to_vmem [thread:$0]  %s280, 16, %s290, [#allocation3]
    %s293 = sld [smem:[#allocation4 + $0xf]]
    %s294 = smul.addr %s293, 16
    %s295 = scalar_lea.hbm %s3, %s294
    %s296 = scalar_lea.vmem [#allocation2], 15
    // Predicated region
    $region102: #{lora_classifier_forward.1} parent=1 // pred_check
      _
    $region103: #{lora_classifier_forward.1} parent=1 // pred_check_branch
      %298 = sbr.rel target = $region105
    $region104: #{lora_classifier_forward.1} parent=1 // pred_region
      %299 = sst [smem:[#allocation12]] [#allocation43]
      %300 = sst [smem:[#allocation13]] [#allocation42]
    $region105: #{lora_classifier_forward.1} parent=1 // pred_fallthru
      _
    %302 = shalt.err (0)
    %s304 = sshll.u32 %s296, 4
    %s305 = int_to_ptr.vmem [resolvable:$true] %s304
    %307 = dma.hbm_to_vmem [thread:$0]  %s295, 16, %s305, [#allocation3]
    %s308 = smul.u32 1, 1
    %s309 = sshll.u32 %s308, 4
    %310 = dma.done [#allocation3], %s309
    %s311 = sshll.u32 %s308, 4
    %312 = dma.done [#allocation3], %s311
    %s313 = sshll.u32 %s308, 4
    %314 = dma.done [#allocation3], %s313
    %s315 = sshll.u32 %s308, 4
    %316 = dma.done [#allocation3], %s315
    %s317 = sshll.u32 %s308, 4
    %318 = dma.done [#allocation3], %s317
    %s319 = sshll.u32 %s308, 4
    %320 = dma.done [#allocation3], %s319
    %s321 = sshll.u32 %s308, 4
    %322 = dma.done [#allocation3], %s321
    %s323 = sshll.u32 %s308, 4
    %324 = dma.done [#allocation3], %s323
    %s325 = sshll.u32 %s308, 4
    %326 = dma.done [#allocation3], %s325
    %s327 = sshll.u32 %s308, 4
    %328 = dma.done [#allocation3], %s327
    %s329 = sshll.u32 %s308, 4
    %330 = dma.done [#allocation3], %s329
    %s331 = sshll.u32 %s308, 4
    %332 = dma.done [#allocation3], %s331
    %s333 = sshll.u32 %s308, 4
    %334 = dma.done [#allocation3], %s333
    %s335 = sshll.u32 %s308, 4
    %336 = dma.done [#allocation3], %s335
    %s337 = sshll.u32 %s308, 4
    %338 = dma.done [#allocation3], %s337
    %s339 = sshll.u32 %s308, 4
    %340 = dma.done [#allocation3], %s339
    %v341 = vlaneseq
    %v342 = vand.u32 %v341, 127
    %v343 = vlaneseq
    %v344 = vshrl.u32 %v343, 7
    %v345 = vmul.u32 %v344, 8
    %v346 = vsub.s32 %v342, %v345
    %vm347 = vcmp.ge.s32.totalorder %v346, 0
    %vm348 = vcmp.lt.s32.totalorder %v346, 8
    %vm349 = vmand %vm347, %vm348
    %v350 = vld [vmem:[%s1] sm:$0x1]
    %v352 = vlaneseq
    %v353 = vshrl.u32 %v352, 7
    %v354 = vsub.s32 0, %v353
    %v355 = vrot.slane %v350, %v354
    %v357 = vsel %vm349, %v355, 0.0
    %v358 = vld [vmem:[#allocation2] sm:$0xff]
    %v359 = vld [vmem:[#allocation2 + $0x8] sm:$0xff]
    %vm360 = vcmask 130048
    %v362 = vsel %vm360, %v357, 0
    %364 = vmatprep.subr.mxu0 0.0
    %365 = vmatpush1.msra.mxu0 0.0
    %366 = vmatprep.subr.mxu0 0.0
    %367 = vmatpush1.msra.mxu0 0.0
    %368 = vmatprep.subr.mxu0 0.0
    %369 = vmatpush1.msra.mxu0 0.0
    %370 = vmatprep.subr.mxu0 0.0
    %371 = vmatpush1.msra.mxu0 0.0
    %372 = vmatprep.subr.mxu0 0.0
    %373 = vmatpush1.msra.mxu0 0.0
    %374 = vmatprep.subr.mxu0 0.0
    %375 = vmatpush1.msra.mxu0 0.0
    %376 = vmatprep.subr.mxu0 0.0
    %377 = vmatpush1.msra.mxu0 0.0
    %378 = vmatprep.subr.mxu0 0.0
    %379 = vmatpush1.msra.mxu0 0.0
    %380 = vmatprep.subr.mxu0 0.0
    %381 = vmatpush1.msra.mxu0 0.0
    %382 = vmatprep.subr.mxu0 0.0
    %383 = vmatpush1.msra.mxu0 0.0
    %384 = vmatprep.subr.mxu0 0.0
    %385 = vmatpush1.msra.mxu0 0.0
    %386 = vmatprep.subr.mxu0 0.0
    %387 = vmatpush1.msra.mxu0 0.0
    %388 = vmatprep.subr.mxu0 0.0
    %389 = vmatpush1.msra.mxu0 0.0
    %390 = vmatprep.subr.mxu0 0.0
    %391 = vmatpush1.msra.mxu0 0.0
    %392 = vmatprep.subr.mxu0 0.0
    %393 = vmatpush1.msra.mxu0 %v359
    %394 = vmatprep.subr.mxu0 0.0
    %395 = vmatpush1.msra.mxu0 %v358
    %396 = vmatprep.subr.mxu0 0.0
    %397 = vmatpush2.msra.mxu0 0.0
    %398 = vmatprep.subr.mxu0 0.0
    %399 = vmatpush2.msra.mxu0 0.0
    %400 = vmatprep.subr.mxu0 0.0
    %401 = vmatpush2.msra.mxu0 0.0
    %402 = vmatprep.subr.mxu0 0.0
    %403 = vmatpush2.msra.mxu0 0.0
    %404 = vmatprep.subr.mxu0 0.0
    %405 = vmatpush2.msra.mxu0 0.0
    %406 = vmatprep.subr.mxu0 0.0
    %407 = vmatpush2.msra.mxu0 0.0
    %408 = vmatprep.subr.mxu0 0.0
    %409 = vmatpush2.msra.mxu0 0.0
    %410 = vmatprep.subr.mxu0 0.0
    %411 = vmatpush2.msra.mxu0 0.0
    %412 = vmatprep.subr.mxu0 0.0
    %413 = vmatpush2.msra.mxu0 0.0
    %414 = vmatprep.subr.mxu0 0.0
    %415 = vmatpush2.msra.mxu0 0.0
    %416 = vmatprep.subr.mxu0 0.0
    %417 = vmatpush2.msra.mxu0 0.0
    %418 = vmatprep.subr.mxu0 0.0
    %419 = vmatpush2.msra.mxu0 0.0
    %420 = vmatprep.subr.mxu0 0.0
    %421 = vmatpush2.msra.mxu0 0.0
    %422 = vmatprep.subr.mxu0 0.0
    %423 = vmatpush2.msra.mxu0 0.0
    %424 = vmatprep.subr.mxu0 0.0
    %425 = vmatpush2.msra.mxu0 0.0
    %426 = vmatprep.subr.mxu0 0.0
    %427 = vmatpush2.msra.mxu0 0.0
    %428 = vmatprep.mubr.f32.mxu0 0.0
    %429 = vmatmul.mubr.f32.gmra.mxu0 %v362
    %v430 = vpop.f32.mrf.mxu0
    %v431 = vadd.f32 0.0, %v430
    %v432 = vpop.f32.mrf.mxu0
    %433 = vdwg.mxu0
    %v434 = vld [vmem:[%s2] sm:$0xff]
    %v435 = vrcp.pop %v434
    %437 = vset.pattern.permute.xlu0 0
    %438 = vperm.xlu0 %437, %v435
    %v439 = vpop.permute.xlu0 %438
    %v441 = vmul.f32 %v431, %v439
    %v442 = vpack.c.bf16 %v441, %v441
    %v443 = vld [vmem:[#allocation7] sm:$0xf]
    %v444 = vld [vmem:[#allocation7 + $0x4] sm:$0xf]
    %v445 = vld [vmem:[#allocation7 + $0x8] sm:$0xf]
    %v446 = vld [vmem:[#allocation7 + $0xc] sm:$0xf]
    %v447 = vld [vmem:[#allocation7 + $0x10] sm:$0xf]
    %v448 = vld [vmem:[#allocation7 + $0x14] sm:$0xf]
    %v449 = vld [vmem:[#allocation7 + $0x18] sm:$0xf]
    %v450 = vld [vmem:[#allocation7 + $0x1c] sm:$0xf]
    %v451 = vld [vmem:[#allocation7 + $0x20] sm:$0xf]
    %v452 = vld [vmem:[#allocation7 + $0x24] sm:$0xf]
    %v453 = vld [vmem:[#allocation7 + $0x28] sm:$0xf]
    %v454 = vld [vmem:[#allocation7 + $0x2c] sm:$0xf]
    %v455 = vld [vmem:[#allocation7 + $0x30] sm:$0xf]
    %v456 = vld [vmem:[#allocation7 + $0x34] sm:$0xf]
    %v457 = vld [vmem:[#allocation7 + $0x38] sm:$0xf]
    %v458 = vld [vmem:[#allocation7 + $0x3c] sm:$0xf]
    %v459 = vld [vmem:[%s5] sm:$0x1]
    %v461 = vlaneseq
    %v462 = vshrl.u32 %v461, 7
    %v463 = vsub.s32 0, %v462
    %v464 = vrot.slane %v459, %v463
    %v482 = vunpack.c.l.b16 %v443
    %v483 = vunpack.c.l.b16 %v444
    %v484 = vunpack.c.l.b16 %v445
    %v485 = vunpack.c.l.b16 %v446
    %v486 = vunpack.c.l.b16 %v447
    %v487 = vunpack.c.l.b16 %v448
    %v488 = vunpack.c.l.b16 %v449
    %v489 = vunpack.c.l.b16 %v450
    %v490 = vunpack.c.l.b16 %v451
    %v491 = vunpack.c.l.b16 %v452
    %v492 = vunpack.c.l.b16 %v453
    %v493 = vunpack.c.l.b16 %v454
    %v494 = vunpack.c.l.b16 %v455
    %v495 = vunpack.c.l.b16 %v456
    %v496 = vunpack.c.l.b16 %v457
    %v497 = vunpack.c.l.b16 %v458
    %v498 = vpack.c.b16 %v483, %v482
    %v499 = vpack.c.b16 %v485, %v484
    %v500 = vpack.c.b16 %v487, %v486
    %v501 = vpack.c.b16 %v489, %v488
    %v502 = vpack.c.b16 %v491, %v490
    %v503 = vpack.c.b16 %v493, %v492
    %v504 = vpack.c.b16 %v495, %v494
    %v505 = vpack.c.b16 %v497, %v496
    %514 = vmatprep.subr.bf16.mxu0 0
    %515 = vmatpush1.bf16.msra.mxu0 %v505
    %516 = vmatprep.subr.bf16.mxu0 0
    %517 = vmatpush1.bf16.msra.mxu0 %v504
    %518 = vmatprep.subr.bf16.mxu0 0
    %519 = vmatpush1.bf16.msra.mxu0 %v503
    %520 = vmatprep.subr.bf16.mxu0 0
    %521 = vmatpush1.bf16.msra.mxu0 %v502
    %522 = vmatprep.subr.bf16.mxu0 0
    %523 = vmatpush1.bf16.msra.mxu0 %v501
    %524 = vmatprep.subr.bf16.mxu0 0
    %525 = vmatpush1.bf16.msra.mxu0 %v500
    %526 = vmatprep.subr.bf16.mxu0 0
    %527 = vmatpush1.bf16.msra.mxu0 %v499
    %528 = vmatprep.subr.bf16.mxu0 0
    %529 = vmatpush1.bf16.msra.mxu0 %v498
    %530 = vmatprep.subr.bf16.mxu0 0
    %531 = vmatpush2.bf16.msra.mxu0 0
    %532 = vmatprep.subr.bf16.mxu0 0
    %533 = vmatpush2.bf16.msra.mxu0 0
    %534 = vmatprep.subr.bf16.mxu0 0
    %535 = vmatpush2.bf16.msra.mxu0 0
    %536 = vmatprep.subr.bf16.mxu0 0
    %537 = vmatpush2.bf16.msra.mxu0 0
    %538 = vmatprep.subr.bf16.mxu0 0
    %539 = vmatpush2.bf16.msra.mxu0 0
    %540 = vmatprep.subr.bf16.mxu0 0
    %541 = vmatpush2.bf16.msra.mxu0 0
    %542 = vmatprep.subr.bf16.mxu0 0
    %543 = vmatpush2.bf16.msra.mxu0 0
    %544 = vmatprep.subr.bf16.mxu0 0
    %545 = vmatpush2.bf16.msra.mxu0 0
    %546 = vmatprep.mubr.bf16.mxu0 0
    %547 = vmatmul.mubr.bf16.gmra.mxu0 %v442
    %v548 = vpop.f32.mrf.mxu0
    %v549 = vadd.f32 %v464, %v548
    %v550 = vpop.f32.mrf.mxu0
    %v551 = vpop.f32.mrf.mxu0
    %v552 = vpop.f32.mrf.mxu0
    %553 = vdwg.mxu0
    %v554 = vtanh.pop %v549
    %v555 = vpack.c.bf16 %v554, %v554
    %v556 = vld [vmem:[#allocation8] sm:$0xf]
    %v557 = vld [vmem:[#allocation8 + $0x4] sm:$0xf]
    %v558 = vld [vmem:[#allocation8 + $0x8] sm:$0xf]
    %v559 = vld [vmem:[#allocation8 + $0xc] sm:$0xf]
    %v560 = vld [vmem:[#allocation8 + $0x10] sm:$0xf]
    %v561 = vld [vmem:[#allocation8 + $0x14] sm:$0xf]
    %v562 = vld [vmem:[#allocation8 + $0x18] sm:$0xf]
    %v563 = vld [vmem:[#allocation8 + $0x1c] sm:$0xf]
    %v564 = vld [vmem:[#allocation8 + $0x20] sm:$0xf]
    %v565 = vld [vmem:[#allocation8 + $0x24] sm:$0xf]
    %v566 = vld [vmem:[#allocation8 + $0x28] sm:$0xf]
    %v567 = vld [vmem:[#allocation8 + $0x2c] sm:$0xf]
    %v568 = vld [vmem:[#allocation8 + $0x30] sm:$0xf]
    %v569 = vld [vmem:[#allocation8 + $0x34] sm:$0xf]
    %v570 = vld [vmem:[#allocation8 + $0x38] sm:$0xf]
    %v571 = vld [vmem:[#allocation8 + $0x3c] sm:$0xf]
    %v572 = vld [vmem:[%s7] sm:$0x1]
    %v574 = vlaneseq
    %v575 = vshrl.u32 %v574, 7
    %v576 = vsub.s32 0, %v575
    %v577 = vrot.slane %v572, %v576
    %v595 = vunpack.c.l.b16 %v556
    %v596 = vunpack.c.l.b16 %v557
    %v597 = vunpack.c.l.b16 %v558
    %v598 = vunpack.c.l.b16 %v559
    %v599 = vunpack.c.l.b16 %v560
    %v600 = vunpack.c.l.b16 %v561
    %v601 = vunpack.c.l.b16 %v562
    %v602 = vunpack.c.l.b16 %v563
    %v603 = vunpack.c.l.b16 %v564
    %v604 = vunpack.c.l.b16 %v565
    %v605 = vunpack.c.l.b16 %v566
    %v606 = vunpack.c.l.b16 %v567
    %v607 = vunpack.c.l.b16 %v568
    %v608 = vunpack.c.l.b16 %v569
    %v609 = vunpack.c.l.b16 %v570
    %v610 = vunpack.c.l.b16 %v571
    %v611 = vpack.c.b16 %v596, %v595
    %v612 = vpack.c.b16 %v598, %v597
    %v613 = vpack.c.b16 %v600, %v599
    %v614 = vpack.c.b16 %v602, %v601
    %v615 = vpack.c.b16 %v604, %v603
    %v616 = vpack.c.b16 %v606, %v605
    %v617 = vpack.c.b16 %v608, %v607
    %v618 = vpack.c.b16 %v610, %v609
    %627 = vmatprep.subr.bf16.mxu0 0
    %628 = vmatpush1.bf16.msra.mxu0 %v618
    %629 = vmatprep.subr.bf16.mxu0 0
    %630 = vmatpush1.bf16.msra.mxu0 %v617
    %631 = vmatprep.subr.bf16.mxu0 0
    %632 = vmatpush1.bf16.msra.mxu0 %v616
    %633 = vmatprep.subr.bf16.mxu0 0
    %634 = vmatpush1.bf16.msra.mxu0 %v615
    %635 = vmatprep.subr.bf16.mxu0 0
    %636 = vmatpush1.bf16.msra.mxu0 %v614
    %637 = vmatprep.subr.bf16.mxu0 0
    %638 = vmatpush1.bf16.msra.mxu0 %v613
    %639 = vmatprep.subr.bf16.mxu0 0
    %640 = vmatpush1.bf16.msra.mxu0 %v612
    %641 = vmatprep.subr.bf16.mxu0 0
    %642 = vmatpush1.bf16.msra.mxu0 %v611
    %643 = vmatprep.subr.bf16.mxu0 0
    %644 = vmatpush2.bf16.msra.mxu0 0
    %645 = vmatprep.subr.bf16.mxu0 0
    %646 = vmatpush2.bf16.msra.mxu0 0
    %647 = vmatprep.subr.bf16.mxu0 0
    %648 = vmatpush2.bf16.msra.mxu0 0
    %649 = vmatprep.subr.bf16.mxu0 0
    %650 = vmatpush2.bf16.msra.mxu0 0
    %651 = vmatprep.subr.bf16.mxu0 0
    %652 = vmatpush2.bf16.msra.mxu0 0
    %653 = vmatprep.subr.bf16.mxu0 0
    %654 = vmatpush2.bf16.msra.mxu0 0
    %655 = vmatprep.subr.bf16.mxu0 0
    %656 = vmatpush2.bf16.msra.mxu0 0
    %657 = vmatprep.subr.bf16.mxu0 0
    %658 = vmatpush2.bf16.msra.mxu0 0
    %659 = vmatprep.mubr.bf16.mxu0 0
    %660 = vmatmul.mubr.bf16.gmra.mxu0 %v555
    %v661 = vpop.f32.mrf.mxu0
    %v662 = vadd.f32 %v577, %v661
    %v663 = vpop.f32.mrf.mxu0
    %v664 = vpop.f32.mrf.mxu0
    %v665 = vpop.f32.mrf.mxu0
    %666 = vdwg.mxu0
    %667 = vst [vmem:[%s8] sm:$0xff] %v662
    // Predicated region
    $region106: #{lora_classifier_forward.1} parent=1 // pred_check
      _
    $region107: #{lora_classifier_forward.1} parent=1 // pred_check_branch
      %669 = sbr.rel (0) target = $region109
    $region108: #{lora_classifier_forward.1} parent=1 // pred_region
      _
    $region109: #{lora_classifier_forward.1} parent=1 // pred_fallthru
      _
    // Predicated region
    $region110: #{lora_classifier_forward.1} parent=1 // pred_check
      _
    $region111: #{lora_classifier_forward.1} parent=1 // pred_check_branch
      %671 = sbr.rel (0) target = $region113
    $region112: #{lora_classifier_forward.1} parent=1 // pred_region
      _
    $region113: #{lora_classifier_forward.1} parent=1 // pred_fallthru
      _
    %672 = vsyncpa [#allocation5], 1
    %673 = vsyncpa [#allocation9], 1
    %674 = vsyncpa [#allocation6], 1
  %675 = vsyncmov [#allocation3]
  %s676 = vpop.sfrf %675
  %p677 = scmp.eq.s32.totalorder %s676, 0
  %p678 = pneg %p677
  %680 = shalt.err (%p678)

</llo_original>
